<compile_context>
chip_gen: v6e
topology: v6e:2x2x1
jax: 0.10.0
libtpu: 0.0.40
codegen_flags: <defaults>
</compile_context>

<pallas_src>
import functools

import jax
import jax.numpy as jnp
from jax import lax
from jax.experimental import pallas as pl
from jax.experimental.pallas import tpu as pltpu

_LANES = 128
_SUBLANES = 8


def _cdiv(a, b):
    return (a + b - 1) // b


def _round_up(x, m):
    return _cdiv(x, m) * m


def _vmem_and_block_budget(itemsize):
    """Generation-aware (VMEM limit, max input-block element count)."""
    try:
        cap = int(pltpu.get_tpu_info().vmem_capacity_bytes)
    except Exception:
        cap = 64 * 1024 * 1024  # conservative fallback == v7x per-TC VMEM
    if cap >= 128 * 1024 * 1024:          # v5e / v6e
        vmem_limit = 64 * 1024 * 1024
    else:                                  # v7x: 64 MiB per TensorCore
        vmem_limit = min(48 * 1024 * 1024, (cap * 3) // 4)
    # Per-element pipeline cost: double-buffered input + double-buffered
    # output (I/O dtype) + ~2 f32 temporaries for the in-kernel working copy.
    per_elem = 4 * itemsize + 8
    # Spend about half the scoped limit on the streamed block; the rest is
    # headroom for gamma/beta slabs and compiler-internal scratch.
    max_block_elems = (vmem_limit // 2) // per_elem
    return vmem_limit, max_block_elems


def _layernorm_block_kernel(x_ref, *refs, inv_n, inv_nm1, eps, affine):
    """Fast path: >= 1 whole sample per grid step. x_ref: (b_tile, R, 128)."""
    o_ref = refs[-1]
    x = x_ref[...].astype(jnp.float32)

    # One elementwise pass for statistics.  Split the reduction: sublane-axis
    # partial sums first (cheap VPU vreg adds), then a single 128-lane XLU
    # cross-lane reduce per sample.
    s1 = jnp.sum(jnp.sum(x, axis=1, keepdims=True), axis=2, keepdims=True)
    s2 = jnp.sum(jnp.sum(x * x, axis=1, keepdims=True), axis=2, keepdims=True)
    mean = s1 * inv_n
    # Unbiased variance (ddof=1) to match torch.Tensor.std(); clamp the tiny
    # negatives that one-pass cancellation can produce before the sqrt.
    # TODO(synk): switch to a two-pass / Welford combine if offset-heavy
    # inputs (|mean| >> std) are expected.
    var = jnp.maximum((s2 - s1 * mean) * inv_nm1, 0.0)
    std = jnp.sqrt(var)
    inv = pl.reciprocal(std + eps)          # per-sample; off the per-element path
    shift = -mean * inv

    y = x * inv + shift                     # fused per-element mul-add
    if affine:
        # gamma/beta arrive pre-broadcast to the (R, 128) slab and pre-cast to
        # f32 on the host, so this is a single mul-add with no per-step cast.
        y = y * refs[0][...] + refs[1][...]
    o_ref[...] = y.astype(o_ref.dtype)


def _layernorm_split_kernel(x_ref, *refs, inv_n, inv_nm1, eps, affine,
                            rows_valid, rows_per_block):
    """Large-sample path.  Grid: (sample, phase, slab).

    Phase 0 accumulates per-sample partial sums into VMEM scratch; phase 1
    re-reads each slab, normalizes and writes the output.
    """
    o_ref, s1_ref, s2_ref = refs[-3], refs[-2], refs[-1]
    phase = pl.program_id(1)
    s = pl.program_id(2)
    x = x_ref[...].astype(jnp.float32)      # (1, rows_per_block, 128)

    # Mask rows past the end of the sample (ragged last slab): OOB block reads
    # have unspecified contents and must not enter the statistics.
    if rows_valid % rows_per_block != 0:
        row = s * rows_per_block + lax.broadcasted_iota(jnp.int32, x.shape, 1)
        xs = jnp.where(row < rows_valid, x, 0.0)
    else:
        xs = x

    @pl.when(jnp.logical_and(phase == 0, s == 0))
    def _():
        s1_ref[...] = jnp.zeros_like(s1_ref)
        s2_ref[...] = jnp.zeros_like(s2_ref)

    @pl.when(phase == 0)
    def _():
        # Keep partials as 128-lane vectors (VPU sublane adds per step); the
        # cross-lane XLU reduce happens once per sample in phase 1.
        s1_ref[...] += jnp.sum(xs, axis=1)           # (1, 128)
        s2_ref[...] += jnp.sum(xs * xs, axis=1)      # (1, 128)
        # Deterministic placeholder; overwritten by the phase-1 visit.
        o_ref[...] = x.astype(o_ref.dtype)

    @pl.when(phase == 1)
    def _():
        s1 = jnp.sum(s1_ref[...], axis=1, keepdims=True)   # (1, 1)
        s2 = jnp.sum(s2_ref[...], axis=1, keepdims=True)   # (1, 1)
        mean = s1 * inv_n
        var = jnp.maximum((s2 - s1 * mean) * inv_nm1, 0.0)
        std = jnp.sqrt(var)
        inv = 1.0 / (std + eps)                            # (1, 1) scalar work
        shift = -mean * inv
        y = x * inv.reshape(1, 1, 1) + shift.reshape(1, 1, 1)
        if affine:
            y = y * refs[0][...] + refs[1][...]
        o_ref[...] = y.astype(o_ref.dtype)


def layernorm_pallas(x, gamma=None, beta=None, eps=1e-5, affine=True,
                     max_block_elems=None):
    """LayerNorm matching model/layernorm.py.

    x: (N, C, H, W). gamma/beta: (C,) when affine=True.  Per-sample mean and
    unbiased std over all non-batch dims; eps added to std (outside sqrt);
    per-channel affine broadcast over H, W.
    """
    N, C, H, W = x.shape
    M = C * H * W
    itemsize = jnp.dtype(x.dtype).itemsize

    vmem_limit, auto_block_elems = _vmem_and_block_budget(itemsize)
    if max_block_elems is None:
        max_block_elems = auto_block_elems

    # Lane-dense layout: flatten each sample and zero-pad to a multiple of 128
    # lanes so every vreg/VMEM row is full and output stores are unmasked wide
    # `vst`.  Zero padding is statistics-neutral (contributes 0 to both sums
    # while 1/M and 1/(M-1) count only real elements).
    L = _LANES
    Mp = _round_up(M, L)
    R = Mp // L
    xf = x.reshape(N, M)
    if Mp != M:
        xf = jnp.pad(xf, ((0, 0), (0, Mp - M)))
    x3 = xf.reshape(N, R, L)

    if affine:
        def slab(p):
            v = jnp.broadcast_to(p.astype(jnp.float32).reshape(C, 1),
                                 (C, H * W)).reshape(M)
            if Mp != M:
                v = jnp.pad(v, (0, Mp - M))
            return v.reshape(R, L)
        g_slab, b_slab = slab(gamma), slab(beta)

    common = dict(inv_n=1.0 / M, inv_nm1=1.0 / max(M - 1, 1),
                  eps=float(eps), affine=affine)

    if Mp <= max_block_elems or R <= _SUBLANES:
        # ---------------- Fast path: whole samples per grid step. ----------
        b_tile = max(1, max_block_elems // Mp)
        if N > 1:
            # Keep >= 2 grid steps so the "parallel" batch axis can be split
            # across v7x's two TensorCores.
            b_tile = min(b_tile, _cdiv(N, 2))
        b_tile = min(b_tile, N)
        grid = (_cdiv(N, b_tile),)   # ragged tail: OOB reads per-sample-local,
                                     # OOB writes dropped by Pallas.

        kernel = functools.partial(_layernorm_block_kernel, **common)
        x_spec = pl.BlockSpec((b_tile, R, L), lambda i: (i, 0, 0))
        in_specs = [x_spec]
        operands = [x3]
        if affine:
            # Constant index map: fetched once, VMEM-resident across steps.
            # TODO(synk): pipeline_mode=pl.Buffered(1) / in-kernel per-channel
            # broadcast to shave the constant double-buffer on v7x at large M.
            const = pl.BlockSpec((R, L), lambda i: (0, 0))
            in_specs += [const, const]
            operands += [g_slab, b_slab]
        out = pl.pallas_call(
            kernel,
            out_shape=jax.ShapeDtypeStruct((N, R, L), x.dtype),
            grid_spec=pltpu.PrefetchScalarGridSpec(
                num_scalar_prefetch=0,
                grid=grid,
                in_specs=in_specs,
                out_specs=pl.BlockSpec((b_tile, R, L), lambda i: (i, 0, 0)),
            ),
            compiler_params=pltpu.CompilerParams(
                dimension_semantics=("parallel",),
                vmem_limit_bytes=vmem_limit,
            ),
        )(*operands)
    else:
        # -------- Large-sample path: split each sample's slab over a second
        # grid axis; two sweeps (phase 0 partial sums, phase 1 normalize). ----
        r_tile = max(_SUBLANES,
                     ((max_block_elems // L) // _SUBLANES) * _SUBLANES)
        r_cap = max(_SUBLANES, (R // _SUBLANES) * _SUBLANES)
        r_tile = min(r_tile, r_cap)
        n_slabs = _cdiv(R, r_tile)
        grid = (N, 2, n_slabs)

        kernel = functools.partial(_layernorm_split_kernel, **common,
                                   rows_valid=R, rows_per_block=r_tile)
        x_spec = pl.BlockSpec((1, r_tile, L), lambda b, p, s: (b, s, 0))
        in_specs = [x_spec]
        operands = [x3]
        if affine:
            const = pl.BlockSpec((r_tile, L), lambda b, p, s: (s, 0))
            in_specs += [const, const]
            operands += [g_slab, b_slab]
        out = pl.pallas_call(
            kernel,
            out_shape=jax.ShapeDtypeStruct((N, R, L), x.dtype),
            grid_spec=pltpu.PrefetchScalarGridSpec(
                num_scalar_prefetch=0,
                grid=grid,
                in_specs=in_specs,
                out_specs=pl.BlockSpec((1, r_tile, L), lambda b, p, s: (b, s, 0)),
                scratch_shapes=[pltpu.VMEM((1, L), jnp.float32),
                                pltpu.VMEM((1, L), jnp.float32)],
            ),
            compiler_params=pltpu.CompilerParams(
                dimension_semantics=("parallel", "arbitrary", "arbitrary"),
                vmem_limit_bytes=vmem_limit,
            ),
        )(*operands)

    out = out.reshape(N, Mp)
    if Mp != M:
        out = out[:, :M]
    return out.reshape(N, C, H, W)


if __name__ == "__main__":
    key = jax.random.PRNGKey(0)
    kx, kg, kx2, kx3 = jax.random.split(key, 4)

    def reference(x, gamma, beta, eps):
        n, c = x.shape[0], x.shape[1]
        xf = x.reshape(n, -1)
        shape = (n,) + (1,) * (x.ndim - 1)
        mean = xf.mean(axis=1).reshape(shape)
        std = jnp.sqrt(xf.var(axis=1, ddof=1)).reshape(shape)
        y = (x - mean) / (std + eps)
        gshape = (1, c) + (1,) * (x.ndim - 2)
        return y * gamma.reshape(gshape) + beta.reshape(gshape)

    eps = 1e-5

    # Primary shape implied by the module: N=2, C=4, H=W=16 (fast path).
    N, C, H, W = 2, 4, 16, 16
    x = jax.random.normal(kx, (N, C, H, W), dtype=jnp.float32)
    gamma = jax.random.uniform(kg, (C,), dtype=jnp.float32)  # ~ torch .uniform_()
    beta = jnp.zeros((C,), dtype=jnp.float32)
    out = jax.block_until_ready(layernorm_pallas(x, gamma, beta, eps=eps))
    assert jnp.allclose(out, reference(x, gamma, beta, eps),
                        atol=1e-4, rtol=1e-4), "fast-path mismatch"

    # Ragged batch + sample size not a multiple of 128 (padded lane-dense path).
    x2 = jax.random.normal(kx2, (3, 5, 3, 7), dtype=jnp.float32)
    g2 = jax.random.uniform(kg, (5,), dtype=jnp.float32)
    b2 = jnp.zeros((5,), dtype=jnp.float32)
    out2 = jax.block_until_ready(layernorm_pallas(x2, g2, b2, eps=eps))
    assert jnp.allclose(out2, reference(x2, g2, b2, eps),
                        atol=1e-4, rtol=1e-4), "padded/ragged-path mismatch"

    # Force the large-sample slab-split path (two-sweep partial-sum stats) by
    # overriding the block budget at a small shape.
    x3 = jax.random.normal(kx3, (2, 3, 32, 32), dtype=jnp.float32)
    g3 = jax.random.uniform(kg, (3,), dtype=jnp.float32)
    b3 = jnp.zeros((3,), dtype=jnp.float32)
    out3 = jax.block_until_ready(
        layernorm_pallas(x3, g3, b3, eps=eps, max_block_elems=16 * 128))
    assert jnp.allclose(out3, reference(x3, g3, b3, eps),
                        atol=1e-4, rtol=1e-4), "slab-split-path mismatch"

    print("KERNEL_OK")
</pallas_src>

<mosaic_0001>
module attributes {stable_mosaic.version = 11 : i64} {
  func.func @_layernorm_block_kernel(%arg0: i32, %arg1: memref<1x8x128xf32, #tpu.memory_space<vmem>>, %arg2: memref<8x128xf32, #tpu.memory_space<vmem>>, %arg3: memref<8x128xf32, #tpu.memory_space<vmem>>, %arg4: memref<1x8x128xf32, #tpu.memory_space<vmem>>) attributes {dimension_semantics = [#tpu.dimension_semantics<parallel>], iteration_bounds = array<i64: 2>, scalar_prefetch = 0 : i64, scratch_operands = 0 : i64, tpu.core_type = #tpu.core_type<tc>, window_params = [{transform_indices = @transform_0, window_bounds = array<i64: 1, 8, 128>}, {pipeline_mode = #tpu.pipeline_mode<synchronous>, transform_indices = @transform_1, window_bounds = array<i64: 8, 128>}, {pipeline_mode = #tpu.pipeline_mode<synchronous>, transform_indices = @transform_2, window_bounds = array<i64: 8, 128>}, {transform_indices = @transform_3, window_bounds = array<i64: 1, 8, 128>}]} {
    %c0 = arith.constant 0 : index
    %c0_0 = arith.constant 0 : index
    %c0_1 = arith.constant 0 : index
    %0 = vector.load %arg1[%c0, %c0_0, %c0_1] : memref<1x8x128xf32, #tpu.memory_space<vmem>>, vector<1x8x128xf32>
    %cst = arith.constant dense<0.000000e+00> : vector<1x128xf32>
    %1 = vector.multi_reduction <add>, %0, %cst [1] : vector<1x8x128xf32> to vector<1x128xf32>
    %2 = vector.shape_cast %1 : vector<1x128xf32> to vector<1x1x128xf32>
    %cst_2 = arith.constant dense<0.000000e+00> : vector<1x1xf32>
    %3 = vector.multi_reduction <add>, %2, %cst_2 [2] : vector<1x1x128xf32> to vector<1x1xf32>
    %4 = vector.shape_cast %3 : vector<1x1xf32> to vector<1x1x1xf32>
    %5 = arith.mulf %0, %0 : vector<1x8x128xf32>
    %cst_3 = arith.constant dense<0.000000e+00> : vector<1x128xf32>
    %6 = vector.multi_reduction <add>, %5, %cst_3 [1] : vector<1x8x128xf32> to vector<1x128xf32>
    %7 = vector.shape_cast %6 : vector<1x128xf32> to vector<1x1x128xf32>
    %cst_4 = arith.constant dense<0.000000e+00> : vector<1x1xf32>
    %8 = vector.multi_reduction <add>, %7, %cst_4 [2] : vector<1x1x128xf32> to vector<1x1xf32>
    %9 = vector.shape_cast %8 : vector<1x1xf32> to vector<1x1x1xf32>
    %cst_5 = arith.constant 9.765625E-4 : f32
    %10 = vector.broadcast %cst_5 : f32 to vector<1x1x1xf32>
    %11 = arith.mulf %4, %10 : vector<1x1x1xf32>
    %12 = arith.mulf %4, %11 : vector<1x1x1xf32>
    %13 = arith.subf %9, %12 : vector<1x1x1xf32>
    %cst_6 = arith.constant 9.77517105E-4 : f32
    %14 = vector.broadcast %cst_6 : f32 to vector<1x1x1xf32>
    %15 = arith.mulf %13, %14 : vector<1x1x1xf32>
    %cst_7 = arith.constant 0.000000e+00 : f32
    %16 = vector.broadcast %cst_7 : f32 to vector<1x1x1xf32>
    %17 = arith.maximumf %15, %16 : vector<1x1x1xf32>
    %18 = math.sqrt %17 : vector<1x1x1xf32>
    %cst_8 = arith.constant 9.99999974E-6 : f32
    %19 = vector.broadcast %cst_8 : f32 to vector<1x1x1xf32>
    %20 = arith.addf %18, %19 : vector<1x1x1xf32>
    %21 = tpu.reciprocal %20 : vector<1x1x1xf32> -> vector<1x1x1xf32>
    %cst_9 = arith.constant 0.000000e+00 : f32
    %22 = vector.broadcast %cst_9 : f32 to vector<1x1x1xf32>
    %23 = arith.subf %22, %11 : vector<1x1x1xf32>
    %24 = arith.mulf %23, %21 : vector<1x1x1xf32>
    %25 = vector.broadcast %21 : vector<1x1x1xf32> to vector<1x8x128xf32>
    %26 = arith.mulf %0, %25 : vector<1x8x128xf32>
    %27 = vector.broadcast %24 : vector<1x1x1xf32> to vector<1x8x128xf32>
    %28 = arith.addf %26, %27 : vector<1x8x128xf32>
    %c0_10 = arith.constant 0 : index
    %c0_11 = arith.constant 0 : index
    %29 = vector.load %arg2[%c0_10, %c0_11] : memref<8x128xf32, #tpu.memory_space<vmem>>, vector<8x128xf32>
    %30 = vector.shape_cast %29 : vector<8x128xf32> to vector<1x8x128xf32>
    %31 = arith.mulf %28, %30 : vector<1x8x128xf32>
    %c0_12 = arith.constant 0 : index
    %c0_13 = arith.constant 0 : index
    %32 = vector.load %arg3[%c0_12, %c0_13] : memref<8x128xf32, #tpu.memory_space<vmem>>, vector<8x128xf32>
    %33 = vector.shape_cast %32 : vector<8x128xf32> to vector<1x8x128xf32>
    %34 = arith.addf %31, %33 : vector<1x8x128xf32>
    %c0_14 = arith.constant 0 : index
    %c0_15 = arith.constant 0 : index
    %c0_16 = arith.constant 0 : index
    %35 = vector.load %arg4[%c0_14, %c0_15, %c0_16] : memref<1x8x128xf32, #tpu.memory_space<vmem>>, vector<1x8x128xf32>
    tpu.vector_store %arg4[%c0_14, %c0_15, %c0_16], %34 {strides = array<i32>} : memref<1x8x128xf32, #tpu.memory_space<vmem>>, vector<1x8x128xf32>,
    return
  }
  func.func @transform_0(%arg0: i32) -> (i32, i32, i32) {
    %c0_i32 = arith.constant 0 : i32
    %c0_i32_0 = arith.constant 0 : i32
    %c0_i32_1 = arith.constant 0 : i32
    return %arg0, %c0_i32, %c0_i32_0 : i32, i32, i32
  }
  func.func @transform_1(%arg0: i32) -> (i32, i32) {
    %c0_i32 = arith.constant 0 : i32
    %c0_i32_0 = arith.constant 0 : i32
    %c0_i32_1 = arith.constant 0 : i32
    return %c0_i32, %c0_i32_0 : i32, i32
  }
  func.func @transform_2(%arg0: i32) -> (i32, i32) {
    %c0_i32 = arith.constant 0 : i32
    %c0_i32_0 = arith.constant 0 : i32
    %c0_i32_1 = arith.constant 0 : i32
    return %c0_i32, %c0_i32_0 : i32, i32
  }
  func.func @transform_3(%arg0: i32) -> (i32, i32, i32) {
    %c0_i32 = arith.constant 0 : i32
    %c0_i32_0 = arith.constant 0 : i32
    %c0_i32_1 = arith.constant 0 : i32
    return %arg0, %c0_i32, %c0_i32_0 : i32, i32, i32
  }
}

</mosaic_0001>

<llo_original>
// kernel: tpu_custom_call.1
$region0: #{tpu_custom_call.1}
  #allocation0 [shape = 'u32[]', space=smem, size = 0x4, offset = 0x4, fixed_abs, tag = 'smem constant byte address 0x4 - core index']
  #allocation1 [shape = 'u32[144,128]{1,0:T(1,128)}', space=vmem, size = 0x12000, scoped, tag = 'internal scratch']
  %s0 = inlined_call_operand.hbm [shape: f32[2,8,128], index: 0, kind: input, shape index: {}]
  %s1 = inlined_call_operand.hbm [shape: f32[8,128], index: 1, kind: input, shape index: {}]
  %s2 = inlined_call_operand.hbm [shape: f32[8,128], index: 2, kind: input, shape index: {}]
  %s3 = inlined_call_operand.hbm [shape: f32[2,8,128], index: 3, kind: output, shape index: {}]
  %s4 = sld [smem:[#allocation0]]
  $region57: #{tpu_custom_call.1} parent=0
    _
  %s6 = ssub.s32 1, %s4
  %s7 = scalar_select 0, %s6, %s4
  $region1: #{tpu_custom_call.1} parent=0
    #allocation2 [shape = 'u8[8192]{0}', space=vmem, size = 0x2000, scoped, tag = 'input window, operand 0']
    #allocation3 [shape = 's32[2]{0}', space=sflag, size = 0x8, scoped, tag = 'scoped memory for tpu_custom_call.1']
    #allocation4 [shape = 's32[2]{0}', space=sflag, size = 0x8, scoped, tag = 'scoped memory for tpu_custom_call.1']
    #allocation5 [shape = 'u8[4096]{0}', space=vmem, size = 0x1000, scoped, tag = 'input window, operand 1, single buffered']
    #allocation6 [shape = 's32[1]{0}', space=sflag, size = 0x4, scoped, tag = 'scoped memory for tpu_custom_call.1']
    #allocation7 [shape = 'u8[4096]{0}', space=vmem, size = 0x1000, scoped, tag = 'input window, operand 2, single buffered']
    #allocation8 [shape = 'u8[8192]{0}', space=vmem, size = 0x2000, scoped, tag = 'output window, operand 0']
    %8 = vsyncpa [#allocation3], 0
    %s9 = scalar_lea.sflag [#allocation3], 1
    %10 = vsyncpa %s9, 0
    %11 = vsyncpa [#allocation6], 0
    %12 = vsyncpa [#allocation4], 0
    %s13 = scalar_lea.sflag [#allocation4], 1
    %14 = vsyncpa %s13, 0
    loop: start=0, step=1, limit=4
    $region2: #{tpu_custom_call.1} parent=1 // loop_pre_header
      _
    $region3: #{tpu_custom_call.1} parent=1 // loop_header
      %s16 = sphi 0, %s20
      %p17 = scmp.ge.s32.totalorder %s16, 4
      %s26 = sphi 0, %s28
      %s29 = sphi 0, %s26
      %s30 = sphi 0, %s29
      %s46 = sphi 0, %s30
      %s50 = sphi 0, %s50
      %s52 = sphi 0, %s50
      %s53 = sphi 0, %s52
      %s67 = sphi 0, %s53
      %s71 = sphi 0, %s71
      %s73 = sphi 0, %s71
      %s74 = sphi 0, %s73
      %s88 = sphi 0, %s74
      %s94 = sphi 0, %s96
      %s97 = sphi 0, %s94
      %s98 = sphi 0, %s97
      %s114 = sphi 0, %s98
    $region4: #{tpu_custom_call.1} parent=1 // loop_header_branch
      %19 = sbr.rel (%p17) target = $region8
    $region5: #{tpu_custom_call.1} parent=1 // loop_body
      %s21 = ssub.s32 %s16, 1
      %s22 = ssub.s32 %s16, 2
      %s23 = sadd.s32 %s16, 1
      %s24 = ssub.s32 %s16, %s23
      %p25 = scmp.eq.s32.totalorder %s24, 0
      %s27 = sadd.s32 %s26, 1
      %s28 = scalar_select %p25, %s26, %s27
      %p31 = pneg %p25
      %p32 = scmp.eq.s32.totalorder %s16, 1
      %p33 = por %p31, %p32
      %p34 = scmp.ne.s32.totalorder %s26, %s29
      %p35 = scmp.eq.s32.totalorder %s16, 0
      %p36 = por %p34, %p35
      %p37 = scmp.ne.s32.totalorder %s26, %s29
      %p38 = scmp.eq.s32.totalorder %s21, 1
      %p39 = por %p37, %p38
      %p40 = scmp.ne.s32.totalorder %s29, %s30
      %p41 = scmp.eq.s32.totalorder %s21, 0
      %p42 = por %p40, %p41
      %p43 = scmp.ne.s32.totalorder %s29, %s30
      %p44 = scmp.eq.s32.totalorder %s22, 1
      %p45 = por %p43, %p44
      %p47 = scmp.ne.s32.totalorder %s30, %s46
      %p48 = scmp.eq.s32.totalorder %s22, 0
      %p49 = por %p47, %p48
      %s51 = sadd.s32 %s50, 1
      %p54 = scmp.eq.s32.totalorder %s16, 1
      %p55 = scmp.ne.s32.totalorder %s50, %s52
      %p56 = scmp.eq.s32.totalorder %s16, 0
      %p57 = por %p55, %p56
      %p58 = scmp.ne.s32.totalorder %s50, %s52
      %p59 = scmp.eq.s32.totalorder %s21, 1
      %p60 = por %p58, %p59
      %p61 = scmp.ne.s32.totalorder %s52, %s53
      %p62 = scmp.eq.s32.totalorder %s21, 0
      %p63 = por %p61, %p62
      %p64 = scmp.ne.s32.totalorder %s52, %s53
      %p65 = scmp.eq.s32.totalorder %s22, 1
      %p66 = por %p64, %p65
      %p68 = scmp.ne.s32.totalorder %s53, %s67
      %p69 = scmp.eq.s32.totalorder %s22, 0
      %p70 = por %p68, %p69
      %s72 = sadd.s32 %s71, 1
      %p75 = scmp.eq.s32.totalorder %s16, 1
      %p76 = scmp.ne.s32.totalorder %s71, %s73
      %p77 = scmp.eq.s32.totalorder %s16, 0
      %p78 = por %p76, %p77
      %p79 = scmp.ne.s32.totalorder %s71, %s73
      %p80 = scmp.eq.s32.totalorder %s21, 1
      %p81 = por %p79, %p80
      %p82 = scmp.ne.s32.totalorder %s73, %s74
      %p83 = scmp.eq.s32.totalorder %s21, 0
      %p84 = por %p82, %p83
      %p85 = scmp.ne.s32.totalorder %s73, %s74
      %p86 = scmp.eq.s32.totalorder %s22, 1
      %p87 = por %p85, %p86
      %p89 = scmp.ne.s32.totalorder %s74, %s88
      %p90 = scmp.eq.s32.totalorder %s22, 0
      %p91 = por %p89, %p90
      %s92 = ssub.s32 %s16, %s23
      %p93 = scmp.eq.s32.totalorder %s92, 0
      %s95 = sadd.s32 %s94, 1
      %s96 = scalar_select %p93, %s94, %s95
      %p99 = pneg %p93
      %p100 = scmp.eq.s32.totalorder %s16, 1
      %p101 = por %p99, %p100
      %p102 = scmp.ne.s32.totalorder %s94, %s97
      %p103 = scmp.eq.s32.totalorder %s16, 0
      %p104 = por %p102, %p103
      %p105 = scmp.ne.s32.totalorder %s94, %s97
      %p106 = scmp.eq.s32.totalorder %s21, 1
      %p107 = por %p105, %p106
      %p108 = scmp.ne.s32.totalorder %s97, %s98
      %p109 = scmp.eq.s32.totalorder %s21, 0
      %p110 = por %p108, %p109
      %p111 = scmp.ne.s32.totalorder %s97, %s98
      %p112 = scmp.eq.s32.totalorder %s22, 1
      %p113 = por %p111, %p112
      %p115 = scmp.ne.s32.totalorder %s98, %s114
      %p116 = scmp.eq.s32.totalorder %s22, 0
      %p117 = por %p115, %p116
      %p118 = scmp.le.s32.totalorder 1, %s16
      %p119 = scmp.lt.s32.totalorder %s16, 3
      %p120 = pnand %p118, %p119
      %p121 = pneg %p120
      // Predicated region
      $region9: #{tpu_custom_call.1} parent=5 // pred_check
        _
      $region10: #{tpu_custom_call.1} parent=5 // pred_check_branch
        %123 = sbr.rel (%p120) target = $region12
      $region11: #{tpu_custom_call.1} parent=5 // pred_region
        %s124 = ssub.s32 %s16, 1
        // Predicated region
        $region13: #{tpu_custom_call.1} parent=11 // pred_check
          %p125 = pneg %p63
        $region14: #{tpu_custom_call.1} parent=11 // pred_check_branch
          %127 = sbr.rel (%p125) target = $region16
        $region15: #{tpu_custom_call.1} parent=11 // pred_region
          %s129 = ssub.s32 128, 128
          %130 = vsyncadd [#allocation6], %s129
          %s132 = sshll.u32 [#allocation5], 4
          %s133 = int_to_ptr.vmem [resolvable:$true] %s132
          %135 = dma.hbm_to_vmem [thread:$0]  %s1, 128, %s133, [#allocation6]
        $region16: #{tpu_custom_call.1} parent=11 // pred_fallthru
          _
        // Predicated region
        $region17: #{tpu_custom_call.1} parent=11 // pred_check
          %p136 = pneg %p84
        $region18: #{tpu_custom_call.1} parent=11 // pred_check_branch
          %138 = sbr.rel (%p136) target = $region20
        $region19: #{tpu_custom_call.1} parent=11 // pred_region
          %s140 = ssub.s32 128, 128
          %141 = vsyncadd [#allocation6], %s140
          %s143 = sshll.u32 [#allocation7], 4
          %s144 = int_to_ptr.vmem [resolvable:$true] %s143
          %146 = dma.hbm_to_vmem [thread:$0]  %s2, 128, %s144, [#allocation6]
        $region20: #{tpu_custom_call.1} parent=11 // pred_fallthru
          _
      $region12: #{tpu_custom_call.1} parent=5 // pred_fallthru
        _
      %p147 = scmp.lt.s32.totalorder %s16, 2
      // Predicated region
      $region21: #{tpu_custom_call.1} parent=5 // pred_check
        %p148 = pneg %p147
      $region22: #{tpu_custom_call.1} parent=5 // pred_check_branch
        %150 = sbr.rel (%p148) target = $region24
      $region23: #{tpu_custom_call.1} parent=5 // pred_region
        // Predicated region
        $region25: #{tpu_custom_call.1} parent=23 // pred_check
          %p151 = pneg %p36
        $region26: #{tpu_custom_call.1} parent=23 // pred_check_branch
          %153 = sbr.rel (%p151) target = $region28
        $region27: #{tpu_custom_call.1} parent=23 // pred_region
          %s154 = sand.u32 %s26, 1
          %s155 = scalar_lea.sflag [#allocation3], %s154
          %s156 = sand.u32 %s26, 1
          %s157 = smul.addr %s156, 8
          %s158 = scalar_lea.vmem [#allocation2], %s157
          %s160 = ssub.s32 128, 128
          %161 = vsyncadd %s155, %s160
          %s162 = smul.addr %s16, 128
          %s163 = scalar_lea.hbm %s0, %s162
          %s165 = sshll.u32 %s158, 4
          %s166 = int_to_ptr.vmem [resolvable:$true] %s165
          %168 = dma.hbm_to_vmem [thread:$0]  %s163, 128, %s166, %s155
        $region28: #{tpu_custom_call.1} parent=23 // pred_fallthru
          _
      $region24: #{tpu_custom_call.1} parent=5 // pred_fallthru
        _
      %p169 = scmp.le.s32.totalorder 1, %s16
      %p170 = scmp.lt.s32.totalorder %s16, 3
      %p171 = pnand %p169, %p170
      %p172 = pneg %p171
      // Predicated region
      $region29: #{tpu_custom_call.1} parent=5 // pred_check
        _
      $region30: #{tpu_custom_call.1} parent=5 // pred_check_branch
        %174 = sbr.rel (%p171) target = $region32
      $region31: #{tpu_custom_call.1} parent=5 // pred_region
        %s175 = ssub.s32 %s16, 1
        %s176 = sand.u32 %s29, 1
        %s177 = scalar_lea.sflag [#allocation3], %s176
        %s178 = sand.u32 %s29, 1
        %s179 = smul.addr %s178, 8
        %s180 = scalar_lea.vmem [#allocation2], %s179
        // Predicated region
        $region33: #{tpu_custom_call.1} parent=31 // pred_check
          %p181 = pneg %p42
        $region34: #{tpu_custom_call.1} parent=31 // pred_check_branch
          %183 = sbr.rel (%p181) target = $region36
        $region35: #{tpu_custom_call.1} parent=31 // pred_region
          %184 = dma.done %s177, 128
        $region36: #{tpu_custom_call.1} parent=31 // pred_fallthru
          _
        // Predicated region
        $region37: #{tpu_custom_call.1} parent=31 // pred_check
          %p185 = pneg %p63
        $region38: #{tpu_custom_call.1} parent=31 // pred_check_branch
          %187 = sbr.rel (%p185) target = $region40
        $region39: #{tpu_custom_call.1} parent=31 // pred_region
          %188 = dma.done [#allocation6], 128
        $region40: #{tpu_custom_call.1} parent=31 // pred_fallthru
          _
        // Predicated region
        $region41: #{tpu_custom_call.1} parent=31 // pred_check
          %p189 = pneg %p84
        $region42: #{tpu_custom_call.1} parent=31 // pred_check_branch
          %191 = sbr.rel (%p189) target = $region44
        $region43: #{tpu_custom_call.1} parent=31 // pred_region
          %192 = dma.done [#allocation6], 128
        $region44: #{tpu_custom_call.1} parent=31 // pred_fallthru
          _
        %s193 = sand.u32 %s29, 1
        %s194 = scalar_lea.sflag [#allocation3], %s193
        %s195 = sand.u32 %s29, 1
        %s196 = smul.addr %s195, 8
        %s197 = scalar_lea.vmem [#allocation2], %s196
        %p198 = pneg %p42
        %p199 = pneg %p39
        %p200 = pneg %p63
        %p201 = pneg %p60
        %p202 = pneg %p84
        %p203 = pneg %p81
        %p204 = pneg %p110
        %p205 = pneg %p107
        %s206 = sand.u32 %s97, 1
        %s207 = scalar_lea.sflag [#allocation4], %s206
        %s208 = sand.u32 %s97, 1
        %s209 = smul.addr %s208, 8
        %s210 = scalar_lea.vmem [#allocation8], %s209
        %v211 = vld [vmem:[%s180] sm:$0xff]
        %v212 = vrot.slane %v211, 4
        %v213 = vadd.f32 %v211, %v212
        %v214 = vrot.slane %v213, 2
        %v215 = vadd.f32 %v213, %v214
        %v216 = vrot.slane %v215, 1
        %v217 = vadd.f32 %v215, %v216
        %218 = vadd.xlane.f32.xlu0 %v217
        %v219 = vpop.xlane.xlu0 %218
        %v220 = vmul.f32 %v211, %v211
        %v221 = vrot.slane %v220, 4
        %v222 = vadd.f32 %v220, %v221
        %v223 = vrot.slane %v222, 2
        %v224 = vadd.f32 %v222, %v223
        %v225 = vrot.slane %v224, 1
        %v226 = vadd.f32 %v224, %v225
        %227 = vadd.xlane.f32.xlu0 %v226
        %v228 = vpop.xlane.xlu0 %227
        %v229 = vmul.f32 %v219, 0.0009765625
        %v230 = vmul.f32 %v219, %v229
        %v231 = vsub.f32 %v228, %v230
        %v232 = vmul.f32 %v231, 0.0009775171
        %v233 = vmax.f32 %v232, 0.0
        %v234 = vrsqrt.pop %v233
        %v235 = vmul.f32 %v233, %v234
        %vm236 = vcmp.eq.f32.partialorder %v233, inf
        %v237 = vsel %vm236, %v233, %v235
        %vm238 = vcmp.eq.f32.partialorder %v233, 0.0
        %v239 = vand.u32 %v233, 2147483648
        %v240 = vsel %vm238, %v239, %v237
        %v241 = vadd.f32 %v240, 1e-05
        %v242 = vrcp.pop %v241
        %v243 = vsub.f32 0.0, %v229
        %v244 = vmul.f32 %v243, %v242
        %v245 = vmul.f32 %v211, %v242
        %v246 = vadd.f32 %v245, %v244
        %v247 = vld [vmem:[#allocation5] sm:$0xff]
        %v248 = vmul.f32 %v246, %v247
        %v249 = vld [vmem:[#allocation7] sm:$0xff]
        %v250 = vadd.f32 %v248, %v249
        %251 = vst [vmem:[%s210] sm:$0xff] %v250
        %s252 = sand.u32 %s97, 1
        %s253 = scalar_lea.sflag [#allocation4], %s252
        %s254 = sand.u32 %s97, 1
        %s255 = smul.addr %s254, 8
        %s256 = scalar_lea.vmem [#allocation8], %s255
        // Predicated region
        $region45: #{tpu_custom_call.1} parent=31 // pred_check
          %p257 = pneg %p107
        $region46: #{tpu_custom_call.1} parent=31 // pred_check_branch
          %259 = sbr.rel (%p257) target = $region48
        $region47: #{tpu_custom_call.1} parent=31 // pred_region
          %s261 = ssub.s32 128, 128
          %262 = vsyncadd %s253, %s261
          %s263 = smul.addr %s21, 128
          %s264 = scalar_lea.hbm %s3, %s263
          %s266 = sshll.u32 %s256, 4
          %s267 = int_to_ptr.vmem [resolvable:$true] %s266
          %269 = dma.vmem_to_hbm [thread:$0]  %s267, 128, %s264, %s253
        $region48: #{tpu_custom_call.1} parent=31 // pred_fallthru
          _
      $region32: #{tpu_custom_call.1} parent=5 // pred_fallthru
        _
      %p270 = scmp.le.s32.totalorder 2, %s16
      // Predicated region
      $region49: #{tpu_custom_call.1} parent=5 // pred_check
        %p271 = pneg %p270
      $region50: #{tpu_custom_call.1} parent=5 // pred_check_branch
        %273 = sbr.rel (%p271) target = $region52
      $region51: #{tpu_custom_call.1} parent=5 // pred_region
        %s274 = ssub.s32 %s16, 2
        // Predicated region
        $region53: #{tpu_custom_call.1} parent=51 // pred_check
          %p275 = pneg %p113
        $region54: #{tpu_custom_call.1} parent=51 // pred_check_branch
          %277 = sbr.rel (%p275) target = $region56
        $region55: #{tpu_custom_call.1} parent=51 // pred_region
          %s278 = sand.u32 %s98, 1
          %s279 = scalar_lea.sflag [#allocation4], %s278
          %s280 = sand.u32 %s98, 1
          %s281 = smul.addr %s280, 8
          %s282 = scalar_lea.vmem [#allocation8], %s281
          %283 = dma.done %s279, 128
        $region56: #{tpu_custom_call.1} parent=51 // pred_fallthru
          _
      $region52: #{tpu_custom_call.1} parent=5 // pred_fallthru
        _
    $region6: #{tpu_custom_call.1} parent=1 // loop_footer
      %s20 = sadd.s32 1, %s16
    $region7: #{tpu_custom_call.1} parent=1 // loop_footer_branch
      %15 = sbr.rel target = $region3
    $region8: #{tpu_custom_call.1} parent=1 // loop_exit
      _
    %284 = vsyncpa [#allocation3], 1
    %s285 = scalar_lea.sflag [#allocation3], 1
    %286 = vsyncpa %s285, 1
    %287 = vsyncpa [#allocation6], 1
    %288 = vsyncpa [#allocation4], 1
    %s289 = scalar_lea.sflag [#allocation4], 1
    %290 = vsyncpa %s289, 1

</llo_original>
